<compile_context>
chip_gen: v5e
topology: v5e:2x2
jax: 0.10.0
libtpu: 0.0.40
codegen_flags: <defaults>
</compile_context>

<pallas_src>
import jax
import jax.numpy as jnp
from jax import lax
from jax.experimental import pallas as pl
from jax.experimental.pallas import tpu as pltpu

_LANE = 128
_SUBLANE = 8

# One-hot MXU gather only for short tables; taller VMEM-resident tables use the
# row-copy kernel (no one-hot / MXU work at all).
_ONEHOT_MAX_STATES = 2048
_ONEHOT_BYTES_CAP = 2 * 1024 * 1024
_ONEHOT_MAX_K = 256

_ROWCOPY_MAX_K = 64            # statically-unrolled row copies per grid step

_HBM_MAX_K = 128               # rows gathered per grid step on the HBM path
_HBM_RING_DEPTH = 32           # outstanding row DMAs
_HBM_MIN_TABLE_BYTES = 1 * 1024 * 1024   # below this the VMEM paths always win
_HBM_TABLE_TO_GATHER_RATIO = 32          # batch-aware dispatch threshold


def _round_up(x: int, m: int) -> int:
    return (x + m - 1) // m * m


def _vmem_capacity_bytes() -> int:
    """Generation-aware VMEM capacity (v5e/v6e: 128 MiB, v7x: 64 MiB/TC)."""
    try:
        info = pltpu.get_tpu_info()
        cap = int(getattr(info, "vmem_capacity_bytes", 0) or 0)
        if cap > 0:
            return cap
    except Exception:
        pass
    return 64 * 1024 * 1024    # conservative fallback: v7x per-TC VMEM


def _vmem_limit_bytes(vmem_cap: int) -> int:
    # v5e/v6e (128 MiB) -> ~96 MiB scoped limit; v7x (64 MiB) -> 48 MiB.
    return min(vmem_cap * 3 // 4, 100 * 1024 * 1024)


def _fast_path_table_budget(vmem_cap: int) -> int:
    # Budget assumes the worst case of the resident table being double-buffered
    # by the pipeline (constant block index), plus in/out blocks + one-hot spill.
    return vmem_cap // 3


def _grid_semantics(steps: int):
    # Megacore split buys nothing (and duplicates the resident-table DMA) for
    # 1-2 step grids.
    return ("parallel",) if steps > 2 else ("arbitrary",)


# ---------------------------------------------------------------------------
# Fast path A: short table resident in VMEM, gather K rows/step via one-hot@MXU
# ---------------------------------------------------------------------------
def _onehot_gather_kernel(idx_ref, table_ref, out_ref):
    # idx_ref:   (K, 1)        int32   row indices for this step
    # table_ref: (n_states, d) float32 whole table (constant block -> resident)
    # out_ref:   (K, d)        float32 output block
    k_rows = out_ref.shape[0]
    n_states = table_ref.shape[0]
    cols = lax.broadcasted_iota(jnp.int32, (k_rows, n_states), 1)
    one_hot = (cols == idx_ref[...]).astype(table_ref.dtype)
    # HIGHEST keeps the f32 gather bit-exact (HIGH's 2-way bf16 split drops the
    # low ~8 mantissa bits even when one operand is an exact one-hot).  MXU is
    # not binding for the <=2048-row tables routed here; taller tables use the
    # row-copy kernel below, which removes the MXU work entirely.
    out_ref[...] = jnp.dot(
        one_hot,
        table_ref[...],
        preferred_element_type=jnp.float32,
        precision=lax.Precision.HIGHEST,
    ).astype(out_ref.dtype)


def _tabular_forward_vmem_onehot(table: jax.Array, indices: jax.Array) -> jax.Array:
    n_states, output_dim = table.shape
    batch = indices.shape[0]
    d_pad = _round_up(output_dim, _LANE)          # lane-dense output blocks

    # Rows per grid step: multiple of 8 (sublane-dense), up to 256 so the
    # 256-wide MXUs on v6e/v7x are filled and grid overhead is amortized,
    # capped so the in-kernel (K, n_states) one-hot stays small.
    k_cap = max(_SUBLANE,
                min(_ONEHOT_MAX_K,
                    (_ONEHOT_BYTES_CAP // max(1, n_states * 4)) // _SUBLANE * _SUBLANE))
    k_rows = min(k_cap, _round_up(batch, _SUBLANE))
    batch_pad = _round_up(batch, k_rows)
    grid_steps = batch_pad // k_rows

    if d_pad != output_dim:
        table = jnp.pad(table, ((0, 0), (0, d_pad - output_dim)))
    idx2d = jnp.pad(indices, (0, batch_pad - batch)).reshape(batch_pad, 1)

    vmem_cap = _vmem_capacity_bytes()
    out = pl.pallas_call(
        _onehot_gather_kernel,
        out_shape=jax.ShapeDtypeStruct((batch_pad, d_pad), table.dtype),
        grid_spec=pltpu.PrefetchScalarGridSpec(
            num_scalar_prefetch=0,
            grid=(grid_steps,),
            in_specs=[
                pl.BlockSpec((k_rows, 1), lambda i: (i, 0)),
                # Whole table as one block; constant index -> fetched once.
                pl.BlockSpec((n_states, d_pad), lambda i: (0, 0)),
            ],
            out_specs=pl.BlockSpec((k_rows, d_pad), lambda i: (i, 0)),
        ),
        compiler_params=pltpu.CompilerParams(
            dimension_semantics=_grid_semantics(grid_steps),
            vmem_limit_bytes=_vmem_limit_bytes(vmem_cap),
        ),
        cost_estimate=pl.CostEstimate(
            flops=2 * batch_pad * n_states * d_pad,
            transcendentals=0,
            bytes_accessed=(n_states * d_pad + 2 * batch_pad * d_pad) * 4,
        ),
    )(idx2d, table)
    return out[:batch, :output_dim]


# ---------------------------------------------------------------------------
# Fast path B: tall table resident in VMEM, per-row dynamic loads (no one-hot)
# ---------------------------------------------------------------------------
def _make_vmem_rowcopy_kernel(k_rows: int):
    def kernel(idx_ref, table_ref, out_ref):
        # idx_ref:   SMEM scalar-prefetch, (batch_pad,) int32
        # table_ref: (n_states, d_pad) float32, VMEM-resident (constant block)
        # out_ref:   (k_rows, d_pad) output block
        base = pl.program_id(0) * k_rows
        for k in range(k_rows):                   # static store offsets
            row = idx_ref[base + k]               # dynamic row load from VMEM
            out_ref[pl.ds(k, 1), :] = table_ref[pl.ds(row, 1), :]
    return kernel


def _tabular_forward_vmem_rowcopy(table: jax.Array, indices: jax.Array) -> jax.Array:
    n_states, output_dim = table.shape
    batch = indices.shape[0]
    d_pad = _round_up(output_dim, _LANE)
    k_rows = max(_SUBLANE, min(_ROWCOPY_MAX_K, _round_up(batch, _SUBLANE)))
    batch_pad = _round_up(batch, k_rows)
    grid_steps = batch_pad // k_rows

    if d_pad != output_dim:
        table = jnp.pad(table, ((0, 0), (0, d_pad - output_dim)))
    idx = jnp.pad(indices, (0, batch_pad - batch))   # padded rows copy row 0

    vmem_cap = _vmem_capacity_bytes()
    out = pl.pallas_call(
        _make_vmem_rowcopy_kernel(k_rows),
        out_shape=jax.ShapeDtypeStruct((batch_pad, d_pad), table.dtype),
        grid_spec=pltpu.PrefetchScalarGridSpec(
            num_scalar_prefetch=1,                   # indices land in SMEM
            grid=(grid_steps,),
            in_specs=[pl.BlockSpec((n_states, d_pad), lambda i, idx_ref: (0, 0))],
            out_specs=pl.BlockSpec((k_rows, d_pad), lambda i, idx_ref: (i, 0)),
        ),
        compiler_params=pltpu.CompilerParams(
            dimension_semantics=_grid_semantics(grid_steps),
            vmem_limit_bytes=_vmem_limit_bytes(vmem_cap),
        ),
        cost_estimate=pl.CostEstimate(
            flops=0,
            transcendentals=0,
            bytes_accessed=(n_states * d_pad + 2 * batch_pad * d_pad) * 4,
        ),
    )(idx, table)
    return out[:batch, :output_dim]


# ---------------------------------------------------------------------------
# HBM path: table stays in HBM, rows DMA'd straight into the output block
# ---------------------------------------------------------------------------
def _make_hbm_gather_kernel(k_rows: int, depth: int, out_cols: int):
    unroll = True if k_rows <= 32 else 8

    def kernel(idx_ref, table_ref, out_ref, sems):
        # idx_ref:   SMEM scalar-prefetch, (batch_pad,) int32
        # table_ref: HBM (pl.ANY) ref, (n_states, output_dim)
        # out_ref:   VMEM (k_rows, d_pad) output block (lane padded)
        # sems:      DMA semaphore ring of size `depth`
        base = pl.program_id(0) * k_rows

        def row_copy(k, row):
            # DMA the table row straight into the output block (no staging copy).
            return pltpu.make_async_copy(
                table_ref.at[pl.ds(row, 1), :],
                out_ref.at[pl.ds(k, 1), pl.ds(0, out_cols)],
                sems.at[k % depth],
            )

        # Prime the ring: `depth` row fetches in flight.
        def prime(k, carry):
            row_copy(k, idx_ref[base + k]).start()
            return carry

        lax.fori_loop(0, depth, prime, 0, unroll=True)

        # Steady state.  SMEM index reads are hoisted above the wait (a DMA
        # wait breaks SMEM sst->sld forwarding); the wait descriptor is rebuilt
        # from the same row index so it matches the started copy exactly.
        def body(k, carry):
            row_k = idx_ref[base + k]
            nxt = jnp.minimum(k + depth, k_rows - 1)     # clamped: no OOB SMEM read
            row_next = idx_ref[base + nxt]
            row_copy(k, row_k).wait()

            @pl.when(k + depth < k_rows)
            def _():
                row_copy(k + depth, row_next).start()

            return carry

        lax.fori_loop(0, k_rows, body, 0, unroll=unroll)

    return kernel


def _tabular_forward_hbm(table: jax.Array, indices: jax.Array) -> jax.Array:
    n_states, output_dim = table.shape
    batch = indices.shape[0]
    d_pad = _round_up(output_dim, _LANE)          # lane-dense out block & writeback
    k_rows = max(_SUBLANE, min(_HBM_MAX_K, _round_up(batch, _SUBLANE)))
    depth = min(_HBM_RING_DEPTH, k_rows)
    batch_pad = _round_up(batch, k_rows)
    grid_steps = batch_pad // k_rows
    idx = jnp.pad(indices, (0, batch_pad - batch))   # padded rows fetch row 0

    out = pl.pallas_call(
        _make_hbm_gather_kernel(k_rows, depth, output_dim),
        out_shape=jax.ShapeDtypeStruct((batch_pad, d_pad), table.dtype),
        grid_spec=pltpu.PrefetchScalarGridSpec(
            num_scalar_prefetch=1,                    # indices land in SMEM up front
            grid=(grid_steps,),
            in_specs=[pl.BlockSpec(memory_space=pl.ANY)],   # table stays in HBM
            out_specs=pl.BlockSpec((k_rows, d_pad), lambda i, idx_ref: (i, 0)),
            scratch_shapes=[pltpu.SemaphoreType.DMA((depth,))],
        ),
        compiler_params=pltpu.CompilerParams(
            dimension_semantics=_grid_semantics(grid_steps),
        ),
        cost_estimate=pl.CostEstimate(
            flops=0,
            transcendentals=0,
            bytes_accessed=(batch_pad * output_dim + batch_pad * d_pad)
            * table.dtype.itemsize
            + batch_pad * 4,
        ),
    )(idx, table)
    return out[:batch, :output_dim]


# ---------------------------------------------------------------------------
# Public wrapper (matches Tabular.forward semantics)
# ---------------------------------------------------------------------------
def tabular_forward(table: jax.Array, preprocessed_states: jax.Array) -> jax.Array:
    """Pallas equivalent of Tabular.forward: table[preprocessed_states.squeeze(-1)]."""
    if preprocessed_states.ndim > 1 and preprocessed_states.shape[-1] == 1:
        indices = preprocessed_states[..., 0]
    else:
        indices = preprocessed_states
    indices = indices.astype(jnp.int32)   # glue: long -> int32 for TPU scalar indexing

    n_states, output_dim = table.shape
    # Torch negative-index semantics, then clamp so no DMA/gather can go OOB
    # (PyTorch would raise on truly out-of-range indices; we clamp instead).
    indices = jnp.where(indices < 0, indices + n_states, indices)
    indices = jnp.clip(indices, 0, n_states - 1)

    batch = indices.shape[0]
    d_pad = _round_up(output_dim, _LANE)
    itemsize = table.dtype.itemsize
    table_vmem_bytes = n_states * d_pad * itemsize
    gathered_bytes = max(1, batch) * d_pad * itemsize

    vmem_cap = _vmem_capacity_bytes()
    table_budget = _fast_path_table_budget(vmem_cap)

    # Batch-aware: for tiny gathers against big tables, a handful of overlapped
    # row DMAs beats streaming the whole table through VMEM.
    small_batch_vs_table = (
        table_vmem_bytes > _HBM_MIN_TABLE_BYTES
        and table_vmem_bytes > _HBM_TABLE_TO_GATHER_RATIO * gathered_bytes
    )

    if table_vmem_bytes > table_budget or small_batch_vs_table:
        return _tabular_forward_hbm(table, indices)
    if n_states > _ONEHOT_MAX_STATES:
        return _tabular_forward_vmem_rowcopy(table, indices)
    return _tabular_forward_vmem_onehot(table, indices)


if __name__ == "__main__":
    key = jax.random.PRNGKey(0)
    keys = jax.random.split(key, 8)

    # --- Case 1: small aligned table -> VMEM one-hot path via dispatch ------
    n_states, output_dim, batch = 64, 128, 8
    # Real module initializes the table to zeros; use random values so the
    # gather result is verifiable.
    table = jax.random.normal(keys[0], (n_states, output_dim), dtype=jnp.float32)
    states = jax.random.randint(keys[1], (batch, 1), 0, n_states, dtype=jnp.int32)
    ref = table[states[:, 0]]
    out = jax.block_until_ready(tabular_forward(table, states))
    assert out.shape == (batch, output_dim) and out.dtype == jnp.float32
    assert jnp.allclose(out, ref, rtol=1e-6, atol=1e-6), "one-hot path mismatch"

    # --- Case 2: same inputs through the HBM direct-to-output DMA path ------
    out_hbm = jax.block_until_ready(
        _tabular_forward_hbm(table, states[:, 0].astype(jnp.int32)))
    assert jnp.array_equal(out_hbm, ref), "HBM path mismatch"

    # --- Case 3: non-(8,128)-aligned shapes (lane padding on both paths) ----
    n2, d2, b2 = 37, 96, 13
    table2 = jax.random.normal(keys[2], (n2, d2), dtype=jnp.float32)
    idx2 = jax.random.randint(keys[3], (b2, 1), 0, n2, dtype=jnp.int32)
    ref2 = table2[idx2[:, 0]]
    out2 = jax.block_until_ready(tabular_forward(table2, idx2))
    assert out2.shape == (b2, d2)
    assert jnp.allclose(out2, ref2, rtol=1e-6, atol=1e-6), "padded one-hot mismatch"
    out2_hbm = jax.block_until_ready(_tabular_forward_hbm(table2, idx2[:, 0]))
    assert jnp.array_equal(out2_hbm, ref2), "padded HBM mismatch"

    # --- Case 4: larger batch -> multi-step grid on the one-hot path --------
    b3 = 300
    idx3 = jax.random.randint(keys[4], (b3, 1), 0, n_states, dtype=jnp.int32)
    ref3 = table[idx3[:, 0]]
    out3 = jax.block_until_ready(tabular_forward(table, idx3))
    assert jnp.allclose(out3, ref3, rtol=1e-6, atol=1e-6), "multi-step one-hot mismatch"

    # --- Case 5: tall table + decent batch -> VMEM row-copy path ------------
    n4, d4, b4 = 3000, 72, 200
    table4 = jax.random.normal(keys[5], (n4, d4), dtype=jnp.float32)
    idx4 = jax.random.randint(keys[6], (b4, 1), 0, n4, dtype=jnp.int32)
    ref4 = table4[idx4[:, 0]]
    out4 = jax.block_until_ready(tabular_forward(table4, idx4))
    assert jnp.array_equal(out4, ref4), "row-copy path mismatch"
    out4_direct = jax.block_until_ready(
        _tabular_forward_vmem_rowcopy(table4, idx4[:, 0].astype(jnp.int32)))
    assert jnp.array_equal(out4_direct, ref4), "row-copy direct mismatch"

    # --- Case 6: tall table + tiny batch -> batch-aware dispatch to HBM -----
    b5 = 5
    idx5 = jax.random.randint(keys[7], (b5, 1), 0, n4, dtype=jnp.int32)
    ref5 = table4[idx5[:, 0]]
    out5 = jax.block_until_ready(tabular_forward(table4, idx5))
    assert jnp.array_equal(out5, ref5), "batch-aware HBM dispatch mismatch"

    # TODO(synk): module's lazy device placement / zero-init Parameter is
    # training-state management, not part of the forward math; not represented.
    print("KERNEL_OK")
</pallas_src>

<mosaic_0001>
module attributes {stable_mosaic.version = 11 : i64} {
  func.func @_onehot_gather_kernel(%arg0: i32, %arg1: memref<8x1xi32, #tpu.memory_space<vmem>>, %arg2: memref<64x128xf32, #tpu.memory_space<vmem>>, %arg3: memref<8x128xf32, #tpu.memory_space<vmem>>) attributes {dimension_semantics = [#tpu.dimension_semantics<arbitrary>], iteration_bounds = array<i64: 1>, scalar_prefetch = 0 : i64, scratch_operands = 0 : i64, tpu.core_type = #tpu.core_type<tc>, window_params = [{transform_indices = @transform_0, window_bounds = array<i64: 8, 1>}, {pipeline_mode = #tpu.pipeline_mode<synchronous>, transform_indices = @transform_1, window_bounds = array<i64: 64, 128>}, {transform_indices = @transform_2, window_bounds = array<i64: 8, 128>}]} {
    %0 = tpu.iota {dimensions = array<i32: 1>} : vector<8x64xi32>
    %c0 = arith.constant 0 : index
    %c0_0 = arith.constant 0 : index
    %1 = vector.load %arg1[%c0, %c0_0] : memref<8x1xi32, #tpu.memory_space<vmem>>, vector<8x1xi32>
    %2 = vector.broadcast %1 : vector<8x1xi32> to vector<8x64xi32>
    %3 = arith.cmpi eq, %0, %2 : vector<8x64xi32>
    %4 = arith.extui %3 : vector<8x64xi1> to vector<8x64xi32>
    %5 = arith.sitofp %4 : vector<8x64xi32> to vector<8x64xf32>
    %c0_1 = arith.constant 0 : index
    %c0_2 = arith.constant 0 : index
    %6 = vector.load %arg2[%c0_1, %c0_2] : memref<64x128xf32, #tpu.memory_space<vmem>>, vector<64x128xf32>
    %cst = arith.constant dense<0.000000e+00> : vector<8x128xf32>
    %7 = tpu.matmul %5, %6, %cst {dimension_numbers = #tpu.dot_dimension_numbers<[1], [0], [0], [1], [0, 0, 1, 1], [], []>, precision = #tpu.contract_precision<fp32>} : vector<8x64xf32>, vector<64x128xf32>, vector<8x128xf32> -> vector<8x128xf32>
    %c0_3 = arith.constant 0 : index
    %c0_4 = arith.constant 0 : index
    %8 = vector.load %arg3[%c0_3, %c0_4] : memref<8x128xf32, #tpu.memory_space<vmem>>, vector<8x128xf32>
    tpu.vector_store %arg3[%c0_3, %c0_4], %7 {strides = array<i32>} : memref<8x128xf32, #tpu.memory_space<vmem>>, vector<8x128xf32>,
    return
  }
  func.func @transform_0(%arg0: i32) -> (i32, i32) {
    %c0_i32 = arith.constant 0 : i32
    %c0_i32_0 = arith.constant 0 : i32
    return %arg0, %c0_i32 : i32, i32
  }
  func.func @transform_1(%arg0: i32) -> (i32, i32) {
    %c0_i32 = arith.constant 0 : i32
    %c0_i32_0 = arith.constant 0 : i32
    %c0_i32_1 = arith.constant 0 : i32
    return %c0_i32, %c0_i32_0 : i32, i32
  }
  func.func @transform_2(%arg0: i32) -> (i32, i32) {
    %c0_i32 = arith.constant 0 : i32
    %c0_i32_0 = arith.constant 0 : i32
    return %arg0, %c0_i32 : i32, i32
  }
}

</mosaic_0001>

<llo_original>
// kernel: tpu_custom_call.1
$region0: #{tpu_custom_call.1}
  #allocation0 [shape = 'u32[]', space=smem, size = 0x4, offset = 0x4, fixed_abs, tag = 'smem constant byte address 0x4 - core index']
  #allocation1 [shape = 'u32[72,128]{1,0:T(1,128)}', space=vmem, size = 0x9000, scoped, tag = 'internal scratch']
  %s0 = inlined_call_operand.vmem [shape: s32[8,1], index: 0, kind: input, shape index: {}]
  %s1 = inlined_call_operand.hbm [shape: f32[64,128], index: 1, kind: input, shape index: {}]
  %s2 = inlined_call_operand.hbm [shape: f32[8,128], index: 2, kind: output, shape index: {}]
  %s3 = sld [smem:[#allocation0]]
  $region22: #{tpu_custom_call.1} parent=0
    _
  %s5 = ssub.s32 1, %s3
  %s6 = scalar_select 0, %s5, %s3
  $region1: #{tpu_custom_call.1} parent=0
    #allocation2 [shape = 'u8[32768]{0}', space=vmem, size = 0x8000, scoped, tag = 'input window, operand 1, single buffered']
    #allocation3 [shape = 's32[1]{0}', space=sflag, size = 0x4, scoped, tag = 'scoped memory for tpu_custom_call.1']
    #allocation4 [shape = 's32[1]{0}', space=sflag, size = 0x4, scoped, tag = 'scoped memory for tpu_custom_call.1']
    #allocation5 [shape = 'u8[4096]{0}', space=vmem, size = 0x1000, scoped, tag = 'output window, operand 0, single buffered']
    %7 = vsyncpa [#allocation3], 0
    %8 = vsyncpa [#allocation4], 0
    // Predicated region
    $region2: #{tpu_custom_call.1} parent=1 // pred_check
      _
    $region3: #{tpu_custom_call.1} parent=1 // pred_check_branch
      %10 = sbr.rel (0) target = $region5
    $region4: #{tpu_custom_call.1} parent=1 // pred_region
      _
    $region5: #{tpu_custom_call.1} parent=1 // pred_fallthru
      _
    // Predicated region
    $region6: #{tpu_custom_call.1} parent=1 // pred_check
      _
    $region7: #{tpu_custom_call.1} parent=1 // pred_check_branch
      %12 = sbr.rel (0) target = $region9
    $region8: #{tpu_custom_call.1} parent=1 // pred_region
      %14 = vsyncadd [#allocation3], 0
      %s15 = sshll.u32 %s1, 4
      %s16 = int_to_ptr.hbm [resolvable:$true] %s15
      %s17 = sshll.u32 [#allocation2], 4
      %s18 = int_to_ptr.vmem [resolvable:$true] %s17
      %23 = dma.hbm_to_vmem [thread:$0]  %s16, 1024, %s18, [#allocation3], 128, 128, 8
    $region9: #{tpu_custom_call.1} parent=1 // pred_fallthru
      _
    // Predicated region
    $region10: #{tpu_custom_call.1} parent=1 // pred_check
      _
    $region11: #{tpu_custom_call.1} parent=1 // pred_check_branch
      %25 = sbr.rel (0) target = $region13
    $region12: #{tpu_custom_call.1} parent=1 // pred_region
      %27 = dma.done [#allocation3], 1024
    $region13: #{tpu_custom_call.1} parent=1 // pred_fallthru
      _
    %v28 = vlaneseq
    %v29 = vand.u32 %v28, 127
    %v30 = vld [vmem:[%s0] sm:$0xff]
    %31 = vset.pattern.permute.xlu0 0
    %32 = vperm.xlu0 %31, %v30
    %v33 = vpop.permute.xlu0 %32
    %vm34 = vcmp.eq.s32.totalorder %v29, %v33
    %v35 = vsel %vm34, 1, 0
    %v36 = vcvt.s32.f32 %v35
    %v37 = vld [vmem:[#allocation2] sm:$0xff]
    %v38 = vld [vmem:[#allocation2 + $0x8] sm:$0xff]
    %v39 = vld [vmem:[#allocation2 + $0x10] sm:$0xff]
    %v40 = vld [vmem:[#allocation2 + $0x18] sm:$0xff]
    %v41 = vld [vmem:[#allocation2 + $0x20] sm:$0xff]
    %v42 = vld [vmem:[#allocation2 + $0x28] sm:$0xff]
    %v43 = vld [vmem:[#allocation2 + $0x30] sm:$0xff]
    %v44 = vld [vmem:[#allocation2 + $0x38] sm:$0xff]
    %vm45 = vcmask 523264
    %v47 = vsel %vm45, %v36, 0
    %49 = vmatpush.msra.mxu0 0.0
    %50 = vmatpush.msra.mxu0 0.0
    %51 = vmatpush.msra.mxu0 0.0
    %52 = vmatpush.msra.mxu0 0.0
    %53 = vmatpush.msra.mxu0 0.0
    %54 = vmatpush.msra.mxu0 0.0
    %55 = vmatpush.msra.mxu0 0.0
    %56 = vmatpush.msra.mxu0 0.0
    %v57 = vand.u32 %v44, 4294901760
    %58 = vmatpush.msra.mxu0 %v57
    %v59 = vand.u32 %v43, 4294901760
    %60 = vmatpush.msra.mxu0 %v59
    %v61 = vand.u32 %v42, 4294901760
    %62 = vmatpush.msra.mxu0 %v61
    %v63 = vand.u32 %v41, 4294901760
    %64 = vmatpush.msra.mxu0 %v63
    %v65 = vand.u32 %v40, 4294901760
    %66 = vmatpush.msra.mxu0 %v65
    %v67 = vand.u32 %v39, 4294901760
    %68 = vmatpush.msra.mxu0 %v67
    %v69 = vand.u32 %v38, 4294901760
    %70 = vmatpush.msra.mxu0 %v69
    %v71 = vand.u32 %v37, 4294901760
    %72 = vmatpush.msra.mxu0 %v71
    %v73 = vand.u32 %v47, 4294901760
    %v74 = vsub.f32 %v47, %v73
    %v75 = vand.u32 %v74, 4294901760
    %v76 = vsub.f32 %v74, %v75
    %v77 = vand.u32 %v76, 4294901760
    %78 = vmatmul.f32.gmra.mxu0 %v77
    %v79 = vpop.f32.mrf.mxu0
    %v80 = vadd.f32 0.0, %v79
    %81 = vdwg.mxu0
    %82 = vmatpush.msra.mxu0 0.0
    %83 = vmatpush.msra.mxu0 0.0
    %84 = vmatpush.msra.mxu0 0.0
    %85 = vmatpush.msra.mxu0 0.0
    %86 = vmatpush.msra.mxu0 0.0
    %87 = vmatpush.msra.mxu0 0.0
    %88 = vmatpush.msra.mxu0 0.0
    %89 = vmatpush.msra.mxu0 0.0
    %v90 = vand.u32 %v44, 4294901760
    %v91 = vsub.f32 %v44, %v90
    %v92 = vand.u32 %v91, 4294901760
    %v93 = vsub.f32 %v91, %v92
    %v94 = vand.u32 %v93, 4294901760
    %95 = vmatpush.msra.mxu0 %v94
    %v96 = vand.u32 %v43, 4294901760
    %v97 = vsub.f32 %v43, %v96
    %v98 = vand.u32 %v97, 4294901760
    %v99 = vsub.f32 %v97, %v98
    %v100 = vand.u32 %v99, 4294901760
    %101 = vmatpush.msra.mxu0 %v100
    %v102 = vand.u32 %v42, 4294901760
    %v103 = vsub.f32 %v42, %v102
    %v104 = vand.u32 %v103, 4294901760
    %v105 = vsub.f32 %v103, %v104
    %v106 = vand.u32 %v105, 4294901760
    %107 = vmatpush.msra.mxu0 %v106
    %v108 = vand.u32 %v41, 4294901760
    %v109 = vsub.f32 %v41, %v108
    %v110 = vand.u32 %v109, 4294901760
    %v111 = vsub.f32 %v109, %v110
    %v112 = vand.u32 %v111, 4294901760
    %113 = vmatpush.msra.mxu0 %v112
    %v114 = vand.u32 %v40, 4294901760
    %v115 = vsub.f32 %v40, %v114
    %v116 = vand.u32 %v115, 4294901760
    %v117 = vsub.f32 %v115, %v116
    %v118 = vand.u32 %v117, 4294901760
    %119 = vmatpush.msra.mxu0 %v118
    %v120 = vand.u32 %v39, 4294901760
    %v121 = vsub.f32 %v39, %v120
    %v122 = vand.u32 %v121, 4294901760
    %v123 = vsub.f32 %v121, %v122
    %v124 = vand.u32 %v123, 4294901760
    %125 = vmatpush.msra.mxu0 %v124
    %v126 = vand.u32 %v38, 4294901760
    %v127 = vsub.f32 %v38, %v126
    %v128 = vand.u32 %v127, 4294901760
    %v129 = vsub.f32 %v127, %v128
    %v130 = vand.u32 %v129, 4294901760
    %131 = vmatpush.msra.mxu0 %v130
    %v132 = vand.u32 %v37, 4294901760
    %v133 = vsub.f32 %v37, %v132
    %v134 = vand.u32 %v133, 4294901760
    %v135 = vsub.f32 %v133, %v134
    %v136 = vand.u32 %v135, 4294901760
    %137 = vmatpush.msra.mxu0 %v136
    %v138 = vand.u32 %v47, 4294901760
    %139 = vmatmul.f32.gmra.mxu0 %v138
    %v140 = vpop.f32.mrf.mxu0
    %v141 = vadd.f32 %v80, %v140
    %142 = vdwg.mxu0
    %143 = vmatpush.msra.mxu0 0.0
    %144 = vmatpush.msra.mxu0 0.0
    %145 = vmatpush.msra.mxu0 0.0
    %146 = vmatpush.msra.mxu0 0.0
    %147 = vmatpush.msra.mxu0 0.0
    %148 = vmatpush.msra.mxu0 0.0
    %149 = vmatpush.msra.mxu0 0.0
    %150 = vmatpush.msra.mxu0 0.0
    %v151 = vand.u32 %v44, 4294901760
    %v152 = vsub.f32 %v44, %v151
    %153 = vmatpush.msra.mxu0 %v152
    %v154 = vand.u32 %v43, 4294901760
    %v155 = vsub.f32 %v43, %v154
    %156 = vmatpush.msra.mxu0 %v155
    %v157 = vand.u32 %v42, 4294901760
    %v158 = vsub.f32 %v42, %v157
    %159 = vmatpush.msra.mxu0 %v158
    %v160 = vand.u32 %v41, 4294901760
    %v161 = vsub.f32 %v41, %v160
    %162 = vmatpush.msra.mxu0 %v161
    %v163 = vand.u32 %v40, 4294901760
    %v164 = vsub.f32 %v40, %v163
    %165 = vmatpush.msra.mxu0 %v164
    %v166 = vand.u32 %v39, 4294901760
    %v167 = vsub.f32 %v39, %v166
    %168 = vmatpush.msra.mxu0 %v167
    %v169 = vand.u32 %v38, 4294901760
    %v170 = vsub.f32 %v38, %v169
    %171 = vmatpush.msra.mxu0 %v170
    %v172 = vand.u32 %v37, 4294901760
    %v173 = vsub.f32 %v37, %v172
    %174 = vmatpush.msra.mxu0 %v173
    %v175 = vand.u32 %v47, 4294901760
    %v176 = vsub.f32 %v47, %v175
    %177 = vmatmul.f32.gmra.mxu0 %v176
    %v178 = vpop.f32.mrf.mxu0
    %v179 = vadd.f32 %v141, %v178
    %180 = vdwg.mxu0
    %181 = vmatpush.msra.mxu0 0.0
    %182 = vmatpush.msra.mxu0 0.0
    %183 = vmatpush.msra.mxu0 0.0
    %184 = vmatpush.msra.mxu0 0.0
    %185 = vmatpush.msra.mxu0 0.0
    %186 = vmatpush.msra.mxu0 0.0
    %187 = vmatpush.msra.mxu0 0.0
    %188 = vmatpush.msra.mxu0 0.0
    %v189 = vand.u32 %v44, 4294901760
    %190 = vmatpush.msra.mxu0 %v189
    %v191 = vand.u32 %v43, 4294901760
    %192 = vmatpush.msra.mxu0 %v191
    %v193 = vand.u32 %v42, 4294901760
    %194 = vmatpush.msra.mxu0 %v193
    %v195 = vand.u32 %v41, 4294901760
    %196 = vmatpush.msra.mxu0 %v195
    %v197 = vand.u32 %v40, 4294901760
    %198 = vmatpush.msra.mxu0 %v197
    %v199 = vand.u32 %v39, 4294901760
    %200 = vmatpush.msra.mxu0 %v199
    %v201 = vand.u32 %v38, 4294901760
    %202 = vmatpush.msra.mxu0 %v201
    %v203 = vand.u32 %v37, 4294901760
    %204 = vmatpush.msra.mxu0 %v203
    %v205 = vand.u32 %v47, 4294901760
    %v206 = vsub.f32 %v47, %v205
    %v207 = vand.u32 %v206, 4294901760
    %208 = vmatmul.f32.gmra.mxu0 %v207
    %v209 = vpop.f32.mrf.mxu0
    %v210 = vadd.f32 %v179, %v209
    %211 = vdwg.mxu0
    %212 = vmatpush.msra.mxu0 0.0
    %213 = vmatpush.msra.mxu0 0.0
    %214 = vmatpush.msra.mxu0 0.0
    %215 = vmatpush.msra.mxu0 0.0
    %216 = vmatpush.msra.mxu0 0.0
    %217 = vmatpush.msra.mxu0 0.0
    %218 = vmatpush.msra.mxu0 0.0
    %219 = vmatpush.msra.mxu0 0.0
    %v220 = vand.u32 %v44, 4294901760
    %v221 = vsub.f32 %v44, %v220
    %v222 = vand.u32 %v221, 4294901760
    %223 = vmatpush.msra.mxu0 %v222
    %v224 = vand.u32 %v43, 4294901760
    %v225 = vsub.f32 %v43, %v224
    %v226 = vand.u32 %v225, 4294901760
    %227 = vmatpush.msra.mxu0 %v226
    %v228 = vand.u32 %v42, 4294901760
    %v229 = vsub.f32 %v42, %v228
    %v230 = vand.u32 %v229, 4294901760
    %231 = vmatpush.msra.mxu0 %v230
    %v232 = vand.u32 %v41, 4294901760
    %v233 = vsub.f32 %v41, %v232
    %v234 = vand.u32 %v233, 4294901760
    %235 = vmatpush.msra.mxu0 %v234
    %v236 = vand.u32 %v40, 4294901760
    %v237 = vsub.f32 %v40, %v236
    %v238 = vand.u32 %v237, 4294901760
    %239 = vmatpush.msra.mxu0 %v238
    %v240 = vand.u32 %v39, 4294901760
    %v241 = vsub.f32 %v39, %v240
    %v242 = vand.u32 %v241, 4294901760
    %243 = vmatpush.msra.mxu0 %v242
    %v244 = vand.u32 %v38, 4294901760
    %v245 = vsub.f32 %v38, %v244
    %v246 = vand.u32 %v245, 4294901760
    %247 = vmatpush.msra.mxu0 %v246
    %v248 = vand.u32 %v37, 4294901760
    %v249 = vsub.f32 %v37, %v248
    %v250 = vand.u32 %v249, 4294901760
    %251 = vmatpush.msra.mxu0 %v250
    %v252 = vand.u32 %v47, 4294901760
    %253 = vmatmul.f32.gmra.mxu0 %v252
    %v254 = vpop.f32.mrf.mxu0
    %v255 = vadd.f32 %v210, %v254
    %256 = vdwg.mxu0
    %257 = vmatpush.msra.mxu0 0.0
    %258 = vmatpush.msra.mxu0 0.0
    %259 = vmatpush.msra.mxu0 0.0
    %260 = vmatpush.msra.mxu0 0.0
    %261 = vmatpush.msra.mxu0 0.0
    %262 = vmatpush.msra.mxu0 0.0
    %263 = vmatpush.msra.mxu0 0.0
    %264 = vmatpush.msra.mxu0 0.0
    %v265 = vand.u32 %v44, 4294901760
    %266 = vmatpush.msra.mxu0 %v265
    %v267 = vand.u32 %v43, 4294901760
    %268 = vmatpush.msra.mxu0 %v267
    %v269 = vand.u32 %v42, 4294901760
    %270 = vmatpush.msra.mxu0 %v269
    %v271 = vand.u32 %v41, 4294901760
    %272 = vmatpush.msra.mxu0 %v271
    %v273 = vand.u32 %v40, 4294901760
    %274 = vmatpush.msra.mxu0 %v273
    %v275 = vand.u32 %v39, 4294901760
    %276 = vmatpush.msra.mxu0 %v275
    %v277 = vand.u32 %v38, 4294901760
    %278 = vmatpush.msra.mxu0 %v277
    %v279 = vand.u32 %v37, 4294901760
    %280 = vmatpush.msra.mxu0 %v279
    %v281 = vand.u32 %v47, 4294901760
    %282 = vmatmul.f32.gmra.mxu0 %v281
    %v283 = vpop.f32.mrf.mxu0
    %v284 = vadd.f32 %v255, %v283
    %285 = vdwg.mxu0
    %286 = vst [vmem:[#allocation5] sm:$0xff] %v284
    // Predicated region
    $region14: #{tpu_custom_call.1} parent=1 // pred_check
      _
    $region15: #{tpu_custom_call.1} parent=1 // pred_check_branch
      %288 = sbr.rel (0) target = $region17
    $region16: #{tpu_custom_call.1} parent=1 // pred_region
      %290 = vsyncadd [#allocation4], 0
      %s292 = sshll.u32 [#allocation5], 4
      %s293 = int_to_ptr.vmem [resolvable:$true] %s292
      %s294 = sshll.u32 %s2, 4
      %s295 = int_to_ptr.hbm [resolvable:$true] %s294
      %297 = dma.vmem_to_hbm [thread:$0]  %s293, 128, %s295, [#allocation4]
    $region17: #{tpu_custom_call.1} parent=1 // pred_fallthru
      _
    // Predicated region
    $region18: #{tpu_custom_call.1} parent=1 // pred_check
      _
    $region19: #{tpu_custom_call.1} parent=1 // pred_check_branch
      %299 = sbr.rel (0) target = $region21
    $region20: #{tpu_custom_call.1} parent=1 // pred_region
      %301 = dma.done [#allocation4], 128
    $region21: #{tpu_custom_call.1} parent=1 // pred_fallthru
      _
    %302 = vsyncpa [#allocation3], 1
    %303 = vsyncpa [#allocation4], 1

</llo_original>
